<compile_context>
chip_gen: v7x
topology: tpu7x:2x2x1
jax: 0.10.0
libtpu: 0.0.40
codegen_flags: <defaults>
</compile_context>

<pallas_src>
import functools

import jax
import jax.numpy as jnp
from jax.experimental import pallas as pl
from jax.experimental.pallas import tpu as pltpu


# ---------------------------------------------------------------------------
# Fused kernel
# ---------------------------------------------------------------------------

def _fused_basic_block_kernel(x_ref, bw1_ref, bw2_ref, g1_ref, b1_ref,
                              g2_ref, b2_ref, proj_ref, o_ref, xp_ref,
                              *, n_img, h_img, inv_count, eps):
    """Whole BasicBlock forward on fully VMEM-resident data.

    x_ref:    (N, H, W*C)          input in row form (lane axis = W*C)
    bw*_ref:  (3*W*C, W*C)         banded 3x3 weights, dy taps concatenated on K
    g*/b*:    (1, W*C)             BN gamma/beta tiled across W
    proj_ref: (W*C, W*C)           0/1 matrix: per-channel sum, broadcast over W
    o_ref:    (N, H, W*C)          output in row form
    xp_ref:   (N*(H+2), W*C) f32   scratch: zero-halo padded slab (batch in M)
    """
    hp = h_img + 2
    wc = x_ref.shape[2]
    m_rows = n_img * hp - 2           # rows of the shifted/concatenated view
    proj = proj_ref[...]

    def rows(y_all, n):
        # valid output rows of image n inside the (m_rows, wc) conv result
        return y_all[n * hp:n * hp + h_img, :]

    def conv3x3_all(bw):
        # 3x3 SAME conv of all images at once: the three dy taps are the three
        # shifted row views of the padded slab, concatenated along K -> one dot.
        xc = jnp.concatenate(
            [xp_ref[0:m_rows, :],
             xp_ref[1:m_rows + 1, :],
             xp_ref[2:m_rows + 2, :]], axis=1)            # (m_rows, 3*wc)
        return jnp.dot(xc, bw, preferred_element_type=jnp.float32)

    def bn_fold(y_all, g_row, b_row):
        # Two-pass batch-norm fold over the valid rows only (biased variance
        # over N,H,W; no E[x^2]-E[x]^2 cancellation).  The per-channel
        # reduce/broadcast across the W groups in the lane axis uses `proj`.
        rs = rows(y_all, 0).sum(axis=0, keepdims=True)
        for n in range(1, n_img):
            rs = rs + rows(y_all, n).sum(axis=0, keepdims=True)
        mean_row = jnp.dot(rs, proj,
                           preferred_element_type=jnp.float32) * inv_count
        rq = jnp.square(rows(y_all, 0) - mean_row).sum(axis=0, keepdims=True)
        for n in range(1, n_img):
            rq = rq + jnp.square(rows(y_all, n) - mean_row).sum(
                axis=0, keepdims=True)
        var_row = jnp.dot(rq, proj,
                          preferred_element_type=jnp.float32) * inv_count
        scale_row = g_row * jax.lax.rsqrt(var_row + eps)
        shift_row = b_row - mean_row * scale_row
        return scale_row, shift_row

    # --- build the zero-halo padded slab for conv1 (zero only halo rows) ---
    zrow = jnp.zeros((1, wc), jnp.float32)
    for n in range(n_img):
        base = n * hp
        xp_ref[base:base + 1, :] = zrow
        xp_ref[base + hp - 1:base + hp, :] = zrow
        xp_ref[base + 1:base + 1 + h_img, :] = x_ref[n].astype(jnp.float32)

    # --- conv1 -> bn1 batch statistics ---
    y1 = conv3x3_all(bw1_ref[...])
    sc1, sh1 = bn_fold(y1, g1_ref[...], b1_ref[...])

    # --- bn1 + relu, refill the padded slab (halo rows are still zero) ---
    for n in range(n_img):
        base = n * hp
        xp_ref[base + 1:base + 1 + h_img, :] = jnp.maximum(
            rows(y1, n) * sc1 + sh1, 0.0)

    # --- conv2 -> bn2 batch statistics ---
    y2 = conv3x3_all(bw2_ref[...])
    sc2, sh2 = bn_fold(y2, g2_ref[...], b2_ref[...])

    # --- bn2 + residual add + relu ---
    for n in range(n_img):
        v = rows(y2, n) * sc2 + sh2 + x_ref[n].astype(jnp.float32)
        o_ref[n] = jnp.maximum(v, 0.0).astype(o_ref.dtype)


# ---------------------------------------------------------------------------
# Wrapper-side helpers (tiny, weight-sized math done once per call)
# ---------------------------------------------------------------------------

def _banded_weights_cat(w_hwio, width):
    """(3, 3, Cin, Cout) HWIO -> (3*W*Cin, W*Cout) block-banded weights.

    bw[dy*W*Cin + wi*Cin + ci, wo*Cout + co] = w[dy, dx, ci, co] with
    wi == wo + dx - 1, so the 3x3 SAME conv of a zero-halo padded slab is a
    single matmul of the three shifted row views concatenated along K.
    """
    per_dy = []
    for dy in range(3):
        bw = None
        for dx in range(3):
            band = jnp.kron(jnp.eye(width, k=1 - dx, dtype=w_hwio.dtype),
                            w_hwio[dy, dx])
            bw = band if bw is None else bw + band
        per_dy.append(bw)
    return jnp.concatenate(per_dy, axis=0)


# ---------------------------------------------------------------------------
# BasicBlock forward (NCHW in / NCHW out, like PyTorch)
# ---------------------------------------------------------------------------

def basic_block_forward(x_nchw, params, eps=1e-5):
    N, C, H, W = x_nchw.shape
    WC = W * C
    x_rows = jnp.transpose(x_nchw, (0, 2, 3, 1)).reshape(N, H, WC)

    bw1 = _banded_weights_cat(params["w1"], W)            # (3*WC, WC)
    bw2 = _banded_weights_cat(params["w2"], W)
    # 0/1 projection: per-channel sum across the W groups, broadcast back.
    proj = jnp.kron(jnp.ones((W, W), jnp.float32),
                    jnp.eye(C, dtype=jnp.float32))        # (WC, WC), constant
    g1 = jnp.tile(params["g1"], W)[None, :]
    b1 = jnp.tile(params["b1"], W)[None, :]
    g2 = jnp.tile(params["g2"], W)[None, :]
    b2 = jnp.tile(params["b2"], W)[None, :]

    kernel = functools.partial(
        _fused_basic_block_kernel,
        n_img=N, h_img=H, inv_count=1.0 / float(N * H * W), eps=float(eps))

    out_rows = pl.pallas_call(
        kernel,
        out_shape=jax.ShapeDtypeStruct((N, H, WC), x_rows.dtype),
        grid=(1,),
        in_specs=[
            pl.BlockSpec((N, H, WC), lambda i: (0, 0, 0)),
            pl.BlockSpec((3 * WC, WC), lambda i: (0, 0)),
            pl.BlockSpec((3 * WC, WC), lambda i: (0, 0)),
            pl.BlockSpec((1, WC), lambda i: (0, 0)),
            pl.BlockSpec((1, WC), lambda i: (0, 0)),
            pl.BlockSpec((1, WC), lambda i: (0, 0)),
            pl.BlockSpec((1, WC), lambda i: (0, 0)),
            pl.BlockSpec((WC, WC), lambda i: (0, 0)),
        ],
        out_specs=pl.BlockSpec((N, H, WC), lambda i: (0, 0, 0)),
        scratch_shapes=[pltpu.VMEM((N * (H + 2), WC), jnp.float32)],
        compiler_params=pltpu.CompilerParams(
            dimension_semantics=("arbitrary",)),
    )(x_rows, bw1, bw2, g1, b1, g2, b2, proj)

    return jnp.transpose(out_rows.reshape(N, H, W, C), (0, 3, 1, 2))


# Pure-JAX reference for validation.
def basic_block_reference(x_nchw, params, eps=1e-5):
    x = jnp.transpose(x_nchw, (0, 2, 3, 1))

    def conv(y, w):
        return jax.lax.conv_general_dilated(
            y, w, (1, 1), "SAME",
            dimension_numbers=("NHWC", "HWIO", "NHWC"))

    def bn(y, g, b):
        m = jnp.mean(y, axis=(0, 1, 2))
        v = jnp.var(y, axis=(0, 1, 2))
        return (y - m) / jnp.sqrt(v + eps) * g + b

    out = jax.nn.relu(bn(conv(x, params["w1"]), params["g1"], params["b1"]))
    out = bn(conv(out, params["w2"]), params["g2"], params["b2"]) + x
    out = jax.nn.relu(out)
    return jnp.transpose(out, (0, 3, 1, 2))


if __name__ == "__main__":
    key = jax.random.PRNGKey(0)
    k_x, k_w1, k_w2, k_g1, k_b1, k_g2, k_b2 = jax.random.split(key, 7)

    N, C, H, W = 2, 4, 16, 16          # inplanes = planes = 4, stride = 1
    x = jax.random.normal(k_x, (N, C, H, W), dtype=jnp.float32)

    params = {
        # HWIO weights (equivalent to PyTorch OIHW transposed)
        "w1": 0.1 * jax.random.normal(k_w1, (3, 3, C, C), dtype=jnp.float32),
        "w2": 0.1 * jax.random.normal(k_w2, (3, 3, C, C), dtype=jnp.float32),
        "g1": 1.0 + 0.1 * jax.random.normal(k_g1, (C,), dtype=jnp.float32),
        "b1": 0.1 * jax.random.normal(k_b1, (C,), dtype=jnp.float32),
        "g2": 1.0 + 0.1 * jax.random.normal(k_g2, (C,), dtype=jnp.float32),
        "b2": 0.1 * jax.random.normal(k_b2, (C,), dtype=jnp.float32),
    }

    out = jax.block_until_ready(jax.jit(basic_block_forward)(x, params))
    ref = jax.block_until_ready(basic_block_reference(x, params))

    assert out.shape == (N, C, H, W)
    assert jnp.allclose(out, ref, atol=2e-4, rtol=2e-4), "mismatch vs reference"

    print("KERNEL_OK")
</pallas_src>

<mosaic_0001>
module attributes {stable_mosaic.version = 11 : i64} {
  func.func @_fused_basic_block_kernel(%arg0: i32, %arg1: memref<2x16x64xf32, #tpu.memory_space<vmem>>, %arg2: memref<192x64xf32, #tpu.memory_space<vmem>>, %arg3: memref<192x64xf32, #tpu.memory_space<vmem>>, %arg4: memref<1x64xf32, #tpu.memory_space<vmem>>, %arg5: memref<1x64xf32, #tpu.memory_space<vmem>>, %arg6: memref<1x64xf32, #tpu.memory_space<vmem>>, %arg7: memref<1x64xf32, #tpu.memory_space<vmem>>, %arg8: memref<64x64xf32, #tpu.memory_space<vmem>>, %arg9: memref<2x16x64xf32, #tpu.memory_space<vmem>>, %arg10: memref<36x64xf32, #tpu.memory_space<vmem>>) attributes {dimension_semantics = [#tpu.dimension_semantics<arbitrary>], iteration_bounds = array<i64: 1>, scalar_prefetch = 0 : i64, scratch_operands = 1 : i64, tpu.core_type = #tpu.core_type<tc>, window_params = [{pipeline_mode = #tpu.pipeline_mode<synchronous>, transform_indices = @transform_0, window_bounds = array<i64: 2, 16, 64>}, {pipeline_mode = #tpu.pipeline_mode<synchronous>, transform_indices = @transform_1, window_bounds = array<i64: 192, 64>}, {pipeline_mode = #tpu.pipeline_mode<synchronous>, transform_indices = @transform_2, window_bounds = array<i64: 192, 64>}, {pipeline_mode = #tpu.pipeline_mode<synchronous>, transform_indices = @transform_3, window_bounds = array<i64: 1, 64>}, {pipeline_mode = #tpu.pipeline_mode<synchronous>, transform_indices = @transform_4, window_bounds = array<i64: 1, 64>}, {pipeline_mode = #tpu.pipeline_mode<synchronous>, transform_indices = @transform_5, window_bounds = array<i64: 1, 64>}, {pipeline_mode = #tpu.pipeline_mode<synchronous>, transform_indices = @transform_6, window_bounds = array<i64: 1, 64>}, {pipeline_mode = #tpu.pipeline_mode<synchronous>, transform_indices = @transform_7, window_bounds = array<i64: 64, 64>}, {pipeline_mode = #tpu.pipeline_mode<synchronous>, transform_indices = @transform_8, window_bounds = array<i64: 2, 16, 64>}]} {
    %c0 = arith.constant 0 : index
    %c0_0 = arith.constant 0 : index
    %0 = vector.load %arg8[%c0, %c0_0] : memref<64x64xf32, #tpu.memory_space<vmem>>, vector<64x64xf32>
    %cst = arith.constant 0.000000e+00 : f32
    %1 = vector.broadcast %cst : f32 to vector<1x64xf32>
    %c0_1 = arith.constant 0 : index
    %c0_2 = arith.constant 0 : index
    %2 = vector.load %arg10[%c0_1, %c0_2] : memref<36x64xf32, #tpu.memory_space<vmem>>, vector<1x64xf32>
    tpu.vector_store %arg10[%c0_1, %c0_2], %1 {strides = array<i32>} : memref<36x64xf32, #tpu.memory_space<vmem>>, vector<1x64xf32>,
    %c17 = arith.constant 17 : index
    %c0_3 = arith.constant 0 : index
    %3 = vector.load %arg10[%c17, %c0_3] : memref<36x64xf32, #tpu.memory_space<vmem>>, vector<1x64xf32>
    tpu.vector_store %arg10[%c17, %c0_3], %1 {strides = array<i32>} : memref<36x64xf32, #tpu.memory_space<vmem>>, vector<1x64xf32>,
    %c0_4 = arith.constant 0 : index
    %c0_5 = arith.constant 0 : index
    %c0_6 = arith.constant 0 : index
    %4 = vector.load %arg1[%c0_4, %c0_5, %c0_6] : memref<2x16x64xf32, #tpu.memory_space<vmem>>, vector<1x16x64xf32>
    %5 = vector.shape_cast %4 : vector<1x16x64xf32> to vector<16x64xf32>
    %c1 = arith.constant 1 : index
    %c0_7 = arith.constant 0 : index
    %6 = vector.load %arg10[%c1, %c0_7] : memref<36x64xf32, #tpu.memory_space<vmem>>, vector<16x64xf32>
    tpu.vector_store %arg10[%c1, %c0_7], %5 {strides = array<i32>} : memref<36x64xf32, #tpu.memory_space<vmem>>, vector<16x64xf32>,
    %c18 = arith.constant 18 : index
    %c0_8 = arith.constant 0 : index
    %7 = vector.load %arg10[%c18, %c0_8] : memref<36x64xf32, #tpu.memory_space<vmem>>, vector<1x64xf32>
    tpu.vector_store %arg10[%c18, %c0_8], %1 {strides = array<i32>} : memref<36x64xf32, #tpu.memory_space<vmem>>, vector<1x64xf32>,
    %c35 = arith.constant 35 : index
    %c0_9 = arith.constant 0 : index
    %8 = vector.load %arg10[%c35, %c0_9] : memref<36x64xf32, #tpu.memory_space<vmem>>, vector<1x64xf32>
    tpu.vector_store %arg10[%c35, %c0_9], %1 {strides = array<i32>} : memref<36x64xf32, #tpu.memory_space<vmem>>, vector<1x64xf32>,
    %c1_10 = arith.constant 1 : index
    %c0_11 = arith.constant 0 : index
    %c0_12 = arith.constant 0 : index
    %9 = vector.load %arg1[%c1_10, %c0_11, %c0_12] : memref<2x16x64xf32, #tpu.memory_space<vmem>>, vector<1x16x64xf32>
    %10 = vector.shape_cast %9 : vector<1x16x64xf32> to vector<16x64xf32>
    %c19 = arith.constant 19 : index
    %c0_13 = arith.constant 0 : index
    %11 = vector.load %arg10[%c19, %c0_13] : memref<36x64xf32, #tpu.memory_space<vmem>>, vector<16x64xf32>
    tpu.vector_store %arg10[%c19, %c0_13], %10 {strides = array<i32>} : memref<36x64xf32, #tpu.memory_space<vmem>>, vector<16x64xf32>,
    %c0_14 = arith.constant 0 : index
    %c0_15 = arith.constant 0 : index
    %12 = vector.load %arg2[%c0_14, %c0_15] : memref<192x64xf32, #tpu.memory_space<vmem>>, vector<192x64xf32>
    %c0_16 = arith.constant 0 : index
    %c0_17 = arith.constant 0 : index
    %13 = vector.load %arg10[%c0_16, %c0_17] : memref<36x64xf32, #tpu.memory_space<vmem>>, vector<34x64xf32>
    %c1_18 = arith.constant 1 : index
    %c0_19 = arith.constant 0 : index
    %14 = vector.load %arg10[%c1_18, %c0_19] : memref<36x64xf32, #tpu.memory_space<vmem>>, vector<34x64xf32>
    %c2 = arith.constant 2 : index
    %c0_20 = arith.constant 0 : index
    %15 = vector.load %arg10[%c2, %c0_20] : memref<36x64xf32, #tpu.memory_space<vmem>>, vector<34x64xf32>
    %16 = tpu.concatenate %13, %14, %15 in 1 : vector<34x64xf32>, vector<34x64xf32>, vector<34x64xf32> -> vector<34x192xf32>
    %cst_21 = arith.constant dense<0.000000e+00> : vector<34x64xf32>
    %17 = tpu.matmul %16, %12, %cst_21 {dimension_numbers = #tpu.dot_dimension_numbers<[1], [0], [0], [1], [0, 0, 1, 1], [], []>} : vector<34x192xf32>, vector<192x64xf32>, vector<34x64xf32> -> vector<34x64xf32>
    %c0_22 = arith.constant 0 : index
    %c0_23 = arith.constant 0 : index
    %18 = vector.load %arg4[%c0_22, %c0_23] : memref<1x64xf32, #tpu.memory_space<vmem>>, vector<1x64xf32>
    %c0_24 = arith.constant 0 : index
    %c0_25 = arith.constant 0 : index
    %19 = vector.load %arg5[%c0_24, %c0_25] : memref<1x64xf32, #tpu.memory_space<vmem>>, vector<1x64xf32>
    %20 = vector.extract_strided_slice %17 {offsets = [0, 0], sizes = [16, 64], strides = [1, 1]} : vector<34x64xf32> to vector<16x64xf32>
    %cst_26 = arith.constant dense<0.000000e+00> : vector<64xf32>
    %21 = vector.multi_reduction <add>, %20, %cst_26 [0] : vector<16x64xf32> to vector<64xf32>
    %22 = vector.shape_cast %21 : vector<64xf32> to vector<1x64xf32>
    %23 = vector.extract_strided_slice %17 {offsets = [18, 0], sizes = [16, 64], strides = [1, 1]} : vector<34x64xf32> to vector<16x64xf32>
    %cst_27 = arith.constant dense<0.000000e+00> : vector<64xf32>
    %24 = vector.multi_reduction <add>, %23, %cst_27 [0] : vector<16x64xf32> to vector<64xf32>
    %25 = vector.shape_cast %24 : vector<64xf32> to vector<1x64xf32>
    %26 = arith.addf %22, %25 : vector<1x64xf32>
    %cst_28 = arith.constant dense<0.000000e+00> : vector<1x64xf32>
    %27 = tpu.matmul %26, %0, %cst_28 {dimension_numbers = #tpu.dot_dimension_numbers<[1], [0], [0], [1], [0, 0, 1, 1], [], []>} : vector<1x64xf32>, vector<64x64xf32>, vector<1x64xf32> -> vector<1x64xf32>
    %cst_29 = arith.constant 0.001953125 : f32
    %28 = vector.broadcast %cst_29 : f32 to vector<1x64xf32>
    %29 = arith.mulf %27, %28 : vector<1x64xf32>
    %30 = vector.extract_strided_slice %17 {offsets = [0, 0], sizes = [16, 64], strides = [1, 1]} : vector<34x64xf32> to vector<16x64xf32>
    %31 = vector.broadcast %29 : vector<1x64xf32> to vector<16x64xf32>
    %32 = arith.subf %30, %31 : vector<16x64xf32>
    %33 = arith.mulf %32, %32 : vector<16x64xf32>
    %cst_30 = arith.constant dense<0.000000e+00> : vector<64xf32>
    %34 = vector.multi_reduction <add>, %33, %cst_30 [0] : vector<16x64xf32> to vector<64xf32>
    %35 = vector.shape_cast %34 : vector<64xf32> to vector<1x64xf32>
    %36 = vector.extract_strided_slice %17 {offsets = [18, 0], sizes = [16, 64], strides = [1, 1]} : vector<34x64xf32> to vector<16x64xf32>
    %37 = vector.broadcast %29 : vector<1x64xf32> to vector<16x64xf32>
    %38 = arith.subf %36, %37 : vector<16x64xf32>
    %39 = arith.mulf %38, %38 : vector<16x64xf32>
    %cst_31 = arith.constant dense<0.000000e+00> : vector<64xf32>
    %40 = vector.multi_reduction <add>, %39, %cst_31 [0] : vector<16x64xf32> to vector<64xf32>
    %41 = vector.shape_cast %40 : vector<64xf32> to vector<1x64xf32>
    %42 = arith.addf %35, %41 : vector<1x64xf32>
    %cst_32 = arith.constant dense<0.000000e+00> : vector<1x64xf32>
    %43 = tpu.matmul %42, %0, %cst_32 {dimension_numbers = #tpu.dot_dimension_numbers<[1], [0], [0], [1], [0, 0, 1, 1], [], []>} : vector<1x64xf32>, vector<64x64xf32>, vector<1x64xf32> -> vector<1x64xf32>
    %cst_33 = arith.constant 0.001953125 : f32
    %44 = vector.broadcast %cst_33 : f32 to vector<1x64xf32>
    %45 = arith.mulf %43, %44 : vector<1x64xf32>
    %cst_34 = arith.constant 9.99999974E-6 : f32
    %46 = vector.broadcast %cst_34 : f32 to vector<1x64xf32>
    %47 = arith.addf %45, %46 : vector<1x64xf32>
    %48 = math.rsqrt %47 : vector<1x64xf32>
    %49 = arith.mulf %18, %48 : vector<1x64xf32>
    %50 = arith.mulf %29, %49 : vector<1x64xf32>
    %51 = arith.subf %19, %50 : vector<1x64xf32>
    %52 = vector.extract_strided_slice %17 {offsets = [0, 0], sizes = [16, 64], strides = [1, 1]} : vector<34x64xf32> to vector<16x64xf32>
    %53 = vector.broadcast %49 : vector<1x64xf32> to vector<16x64xf32>
    %54 = arith.mulf %52, %53 : vector<16x64xf32>
    %55 = vector.broadcast %51 : vector<1x64xf32> to vector<16x64xf32>
    %56 = arith.addf %54, %55 : vector<16x64xf32>
    %cst_35 = arith.constant 0.000000e+00 : f32
    %57 = vector.broadcast %cst_35 : f32 to vector<16x64xf32>
    %58 = arith.maximumf %56, %57 : vector<16x64xf32>
    %c1_36 = arith.constant 1 : index
    %c0_37 = arith.constant 0 : index
    %59 = vector.load %arg10[%c1_36, %c0_37] : memref<36x64xf32, #tpu.memory_space<vmem>>, vector<16x64xf32>
    tpu.vector_store %arg10[%c1_36, %c0_37], %58 {strides = array<i32>} : memref<36x64xf32, #tpu.memory_space<vmem>>, vector<16x64xf32>,
    %60 = vector.extract_strided_slice %17 {offsets = [18, 0], sizes = [16, 64], strides = [1, 1]} : vector<34x64xf32> to vector<16x64xf32>
    %61 = vector.broadcast %49 : vector<1x64xf32> to vector<16x64xf32>
    %62 = arith.mulf %60, %61 : vector<16x64xf32>
    %63 = vector.broadcast %51 : vector<1x64xf32> to vector<16x64xf32>
    %64 = arith.addf %62, %63 : vector<16x64xf32>
    %cst_38 = arith.constant 0.000000e+00 : f32
    %65 = vector.broadcast %cst_38 : f32 to vector<16x64xf32>
    %66 = arith.maximumf %64, %65 : vector<16x64xf32>
    %c19_39 = arith.constant 19 : index
    %c0_40 = arith.constant 0 : index
    %67 = vector.load %arg10[%c19_39, %c0_40] : memref<36x64xf32, #tpu.memory_space<vmem>>, vector<16x64xf32>
    tpu.vector_store %arg10[%c19_39, %c0_40], %66 {strides = array<i32>} : memref<36x64xf32, #tpu.memory_space<vmem>>, vector<16x64xf32>,
    %c0_41 = arith.constant 0 : index
    %c0_42 = arith.constant 0 : index
    %68 = vector.load %arg3[%c0_41, %c0_42] : memref<192x64xf32, #tpu.memory_space<vmem>>, vector<192x64xf32>
    %c0_43 = arith.constant 0 : index
    %c0_44 = arith.constant 0 : index
    %69 = vector.load %arg10[%c0_43, %c0_44] : memref<36x64xf32, #tpu.memory_space<vmem>>, vector<34x64xf32>
    %c1_45 = arith.constant 1 : index
    %c0_46 = arith.constant 0 : index
    %70 = vector.load %arg10[%c1_45, %c0_46] : memref<36x64xf32, #tpu.memory_space<vmem>>, vector<34x64xf32>
    %c2_47 = arith.constant 2 : index
    %c0_48 = arith.constant 0 : index
    %71 = vector.load %arg10[%c2_47, %c0_48] : memref<36x64xf32, #tpu.memory_space<vmem>>, vector<34x64xf32>
    %72 = tpu.concatenate %69, %70, %71 in 1 : vector<34x64xf32>, vector<34x64xf32>, vector<34x64xf32> -> vector<34x192xf32>
    %cst_49 = arith.constant dense<0.000000e+00> : vector<34x64xf32>
    %73 = tpu.matmul %72, %68, %cst_49 {dimension_numbers = #tpu.dot_dimension_numbers<[1], [0], [0], [1], [0, 0, 1, 1], [], []>} : vector<34x192xf32>, vector<192x64xf32>, vector<34x64xf32> -> vector<34x64xf32>
    %c0_50 = arith.constant 0 : index
    %c0_51 = arith.constant 0 : index
    %74 = vector.load %arg6[%c0_50, %c0_51] : memref<1x64xf32, #tpu.memory_space<vmem>>, vector<1x64xf32>
    %c0_52 = arith.constant 0 : index
    %c0_53 = arith.constant 0 : index
    %75 = vector.load %arg7[%c0_52, %c0_53] : memref<1x64xf32, #tpu.memory_space<vmem>>, vector<1x64xf32>
    %76 = vector.extract_strided_slice %73 {offsets = [0, 0], sizes = [16, 64], strides = [1, 1]} : vector<34x64xf32> to vector<16x64xf32>
    %cst_54 = arith.constant dense<0.000000e+00> : vector<64xf32>
    %77 = vector.multi_reduction <add>, %76, %cst_54 [0] : vector<16x64xf32> to vector<64xf32>
    %78 = vector.shape_cast %77 : vector<64xf32> to vector<1x64xf32>
    %79 = vector.extract_strided_slice %73 {offsets = [18, 0], sizes = [16, 64], strides = [1, 1]} : vector<34x64xf32> to vector<16x64xf32>
    %cst_55 = arith.constant dense<0.000000e+00> : vector<64xf32>
    %80 = vector.multi_reduction <add>, %79, %cst_55 [0] : vector<16x64xf32> to vector<64xf32>
    %81 = vector.shape_cast %80 : vector<64xf32> to vector<1x64xf32>
    %82 = arith.addf %78, %81 : vector<1x64xf32>
    %cst_56 = arith.constant dense<0.000000e+00> : vector<1x64xf32>
    %83 = tpu.matmul %82, %0, %cst_56 {dimension_numbers = #tpu.dot_dimension_numbers<[1], [0], [0], [1], [0, 0, 1, 1], [], []>} : vector<1x64xf32>, vector<64x64xf32>, vector<1x64xf32> -> vector<1x64xf32>
    %cst_57 = arith.constant 0.001953125 : f32
    %84 = vector.broadcast %cst_57 : f32 to vector<1x64xf32>
    %85 = arith.mulf %83, %84 : vector<1x64xf32>
    %86 = vector.extract_strided_slice %73 {offsets = [0, 0], sizes = [16, 64], strides = [1, 1]} : vector<34x64xf32> to vector<16x64xf32>
    %87 = vector.broadcast %85 : vector<1x64xf32> to vector<16x64xf32>
    %88 = arith.subf %86, %87 : vector<16x64xf32>
    %89 = arith.mulf %88, %88 : vector<16x64xf32>
    %cst_58 = arith.constant dense<0.000000e+00> : vector<64xf32>
    %90 = vector.multi_reduction <add>, %89, %cst_58 [0] : vector<16x64xf32> to vector<64xf32>
    %91 = vector.shape_cast %90 : vector<64xf32> to vector<1x64xf32>
    %92 = vector.extract_strided_slice %73 {offsets = [18, 0], sizes = [16, 64], strides = [1, 1]} : vector<34x64xf32> to vector<16x64xf32>
    %93 = vector.broadcast %85 : vector<1x64xf32> to vector<16x64xf32>
    %94 = arith.subf %92, %93 : vector<16x64xf32>
    %95 = arith.mulf %94, %94 : vector<16x64xf32>
    %cst_59 = arith.constant dense<0.000000e+00> : vector<64xf32>
    %96 = vector.multi_reduction <add>, %95, %cst_59 [0] : vector<16x64xf32> to vector<64xf32>
    %97 = vector.shape_cast %96 : vector<64xf32> to vector<1x64xf32>
    %98 = arith.addf %91, %97 : vector<1x64xf32>
    %cst_60 = arith.constant dense<0.000000e+00> : vector<1x64xf32>
    %99 = tpu.matmul %98, %0, %cst_60 {dimension_numbers = #tpu.dot_dimension_numbers<[1], [0], [0], [1], [0, 0, 1, 1], [], []>} : vector<1x64xf32>, vector<64x64xf32>, vector<1x64xf32> -> vector<1x64xf32>
    %cst_61 = arith.constant 0.001953125 : f32
    %100 = vector.broadcast %cst_61 : f32 to vector<1x64xf32>
    %101 = arith.mulf %99, %100 : vector<1x64xf32>
    %cst_62 = arith.constant 9.99999974E-6 : f32
    %102 = vector.broadcast %cst_62 : f32 to vector<1x64xf32>
    %103 = arith.addf %101, %102 : vector<1x64xf32>
    %104 = math.rsqrt %103 : vector<1x64xf32>
    %105 = arith.mulf %74, %104 : vector<1x64xf32>
    %106 = arith.mulf %85, %105 : vector<1x64xf32>
    %107 = arith.subf %75, %106 : vector<1x64xf32>
    %108 = vector.extract_strided_slice %73 {offsets = [0, 0], sizes = [16, 64], strides = [1, 1]} : vector<34x64xf32> to vector<16x64xf32>
    %109 = vector.broadcast %105 : vector<1x64xf32> to vector<16x64xf32>
    %110 = arith.mulf %108, %109 : vector<16x64xf32>
    %111 = vector.broadcast %107 : vector<1x64xf32> to vector<16x64xf32>
    %112 = arith.addf %110, %111 : vector<16x64xf32>
    %c0_63 = arith.constant 0 : index
    %c0_64 = arith.constant 0 : index
    %c0_65 = arith.constant 0 : index
    %113 = vector.load %arg1[%c0_63, %c0_64, %c0_65] : memref<2x16x64xf32, #tpu.memory_space<vmem>>, vector<1x16x64xf32>
    %114 = vector.shape_cast %113 : vector<1x16x64xf32> to vector<16x64xf32>
    %115 = arith.addf %112, %114 : vector<16x64xf32>
    %cst_66 = arith.constant 0.000000e+00 : f32
    %116 = vector.broadcast %cst_66 : f32 to vector<16x64xf32>
    %117 = arith.maximumf %115, %116 : vector<16x64xf32>
    %c0_67 = arith.constant 0 : index
    %c0_68 = arith.constant 0 : index
    %c0_69 = arith.constant 0 : index
    %118 = vector.load %arg9[%c0_67, %c0_68, %c0_69] : memref<2x16x64xf32, #tpu.memory_space<vmem>>, vector<1x16x64xf32>
    %119 = vector.shape_cast %118 : vector<1x16x64xf32> to vector<16x64xf32>
    %120 = vector.shape_cast %117 : vector<16x64xf32> to vector<1x16x64xf32>
    tpu.vector_store %arg9[%c0_67, %c0_68, %c0_69], %120 {strides = array<i32>} : memref<2x16x64xf32, #tpu.memory_space<vmem>>, vector<1x16x64xf32>,
    %121 = vector.extract_strided_slice %73 {offsets = [18, 0], sizes = [16, 64], strides = [1, 1]} : vector<34x64xf32> to vector<16x64xf32>
    %122 = vector.broadcast %105 : vector<1x64xf32> to vector<16x64xf32>
    %123 = arith.mulf %121, %122 : vector<16x64xf32>
    %124 = vector.broadcast %107 : vector<1x64xf32> to vector<16x64xf32>
    %125 = arith.addf %123, %124 : vector<16x64xf32>
    %c1_70 = arith.constant 1 : index
    %c0_71 = arith.constant 0 : index
    %c0_72 = arith.constant 0 : index
    %126 = vector.load %arg1[%c1_70, %c0_71, %c0_72] : memref<2x16x64xf32, #tpu.memory_space<vmem>>, vector<1x16x64xf32>
    %127 = vector.shape_cast %126 : vector<1x16x64xf32> to vector<16x64xf32>
    %128 = arith.addf %125, %127 : vector<16x64xf32>
    %cst_73 = arith.constant 0.000000e+00 : f32
    %129 = vector.broadcast %cst_73 : f32 to vector<16x64xf32>
    %130 = arith.maximumf %128, %129 : vector<16x64xf32>
    %c1_74 = arith.constant 1 : index
    %c0_75 = arith.constant 0 : index
    %c0_76 = arith.constant 0 : index
    %131 = vector.load %arg9[%c1_74, %c0_75, %c0_76] : memref<2x16x64xf32, #tpu.memory_space<vmem>>, vector<1x16x64xf32>
    %132 = vector.shape_cast %131 : vector<1x16x64xf32> to vector<16x64xf32>
    %133 = vector.shape_cast %130 : vector<16x64xf32> to vector<1x16x64xf32>
    tpu.vector_store %arg9[%c1_74, %c0_75, %c0_76], %133 {strides = array<i32>} : memref<2x16x64xf32, #tpu.memory_space<vmem>>, vector<1x16x64xf32>,
    return
  }
  func.func @transform_0(%arg0: i32) -> (i32, i32, i32) {
    %c0_i32 = arith.constant 0 : i32
    %c0_i32_0 = arith.constant 0 : i32
    %c0_i32_1 = arith.constant 0 : i32
    %c0_i32_2 = arith.constant 0 : i32
    return %c0_i32, %c0_i32_0, %c0_i32_1 : i32, i32, i32
  }
  func.func @transform_1(%arg0: i32) -> (i32, i32) {
    %c0_i32 = arith.constant 0 : i32
    %c0_i32_0 = arith.constant 0 : i32
    %c0_i32_1 = arith.constant 0 : i32
    return %c0_i32, %c0_i32_0 : i32, i32
  }
  func.func @transform_2(%arg0: i32) -> (i32, i32) {
    %c0_i32 = arith.constant 0 : i32
    %c0_i32_0 = arith.constant 0 : i32
    %c0_i32_1 = arith.constant 0 : i32
    return %c0_i32, %c0_i32_0 : i32, i32
  }
  func.func @transform_3(%arg0: i32) -> (i32, i32) {
    %c0_i32 = arith.constant 0 : i32
    %c0_i32_0 = arith.constant 0 : i32
    %c0_i32_1 = arith.constant 0 : i32
    return %c0_i32, %c0_i32_0 : i32, i32
  }
  func.func @transform_4(%arg0: i32) -> (i32, i32) {
    %c0_i32 = arith.constant 0 : i32
    %c0_i32_0 = arith.constant 0 : i32
    %c0_i32_1 = arith.constant 0 : i32
    return %c0_i32, %c0_i32_0 : i32, i32
  }
  func.func @transform_5(%arg0: i32) -> (i32, i32) {
    %c0_i32 = arith.constant 0 : i32
    %c0_i32_0 = arith.constant 0 : i32
    %c0_i32_1 = arith.constant 0 : i32
    return %c0_i32, %c0_i32_0 : i32, i32
  }
  func.func @transform_6(%arg0: i32) -> (i32, i32) {
    %c0_i32 = arith.constant 0 : i32
    %c0_i32_0 = arith.constant 0 : i32
    %c0_i32_1 = arith.constant 0 : i32
    return %c0_i32, %c0_i32_0 : i32, i32
  }
  func.func @transform_7(%arg0: i32) -> (i32, i32) {
    %c0_i32 = arith.constant 0 : i32
    %c0_i32_0 = arith.constant 0 : i32
    %c0_i32_1 = arith.constant 0 : i32
    return %c0_i32, %c0_i32_0 : i32, i32
  }
  func.func @transform_8(%arg0: i32) -> (i32, i32, i32) {
    %c0_i32 = arith.constant 0 : i32
    %c0_i32_0 = arith.constant 0 : i32
    %c0_i32_1 = arith.constant 0 : i32
    %c0_i32_2 = arith.constant 0 : i32
    return %c0_i32, %c0_i32_0, %c0_i32_1 : i32, i32, i32
  }
}

</mosaic_0001>

<llo_original>
// kernel: tile.23
$region0: #{tile.23}
  #allocation0 [shape = 's32[1]{0}', space=sflag, size = 0x4, scoped, tag = 'scoped memory for tile.23']
  %s0 = inlined_call_operand.vmem [shape: f32[4], index: 0, kind: input, shape index: {}]
  %s1 = inlined_call_operand.vmem [shape: f32[16,4], index: 1, kind: output, shape index: {}]
  // Predicated region
  $region2: #{tile.23} parent=0 // pred_check
    _
  $region3: #{tile.23} parent=0 // pred_check_branch
    %3 = sbr.rel (0) target = $region5
  $region4: #{tile.23} parent=0 // pred_region
    _
  $region5: #{tile.23} parent=0 // pred_fallthru
    _
  %v4 = vld [vmem:[%s0] ss:$0 sm:$0xff]
  %5 = vst [vmem:[%s1] sm:$0xff] %v4
  %s6 = scalar_lea.vmem %s1, 8
  %7 = vst [vmem:[%s6] sm:$0xff] %v4

// kernel: tile.24
$region0: #{tile.24}
  %s0 = inlined_call_operand.vmem [shape: f32[16,4], index: 0, kind: input, shape index: {}]
  %s1 = inlined_call_operand.vmem [shape: f32[1,64], index: 1, kind: output, shape index: {}]
  $region1: #{tile.24} parent=0
    #allocation0 [shape = 'u8[4096]{0}', space=vmem, size = 0x1000, scoped, tag = 'scoped mem for output reshape']
    %v2 = vld [vmem:[%s0] sm:$0x1]
    %vm3 = vcmask 31744
    %4 = vst.msk [vmem:[#allocation0] sm:$0x1] %vm3, %v2
    %s5 = scalar_lea.vmem %s0, 15
    %v6 = vld [vmem:[%s5] sm:$0x1]
    %7 = vrot.lane.b32.xlu0 %v6, 60
    %v8 = vpop.permute.xlu0 %7
    %vm9 = vcmask 523744
    %10 = vst.msk [vmem:[#allocation0] sm:$0x1] %vm9, %v8
    %s11 = scalar_lea.vmem %s0, 14
    %v12 = vld [vmem:[%s11] sm:$0x1]
    %13 = vrot.lane.b32.xlu0 %v12, 56
    %v14 = vpop.permute.xlu0 %13
    %vm15 = vcmask 490944
    %16 = vst.msk [vmem:[#allocation0] sm:$0x1] %vm15, %v14
    %s17 = scalar_lea.vmem %s0, 13
    %v18 = vld [vmem:[%s17] sm:$0x1]
    %19 = vrot.lane.b32.xlu0 %v18, 52
    %v20 = vpop.permute.xlu0 %19
    %vm21 = vcmask 458144
    %22 = vst.msk [vmem:[#allocation0] sm:$0x1] %vm21, %v20
    %s23 = scalar_lea.vmem %s0, 12
    %v24 = vld [vmem:[%s23] sm:$0x1]
    %25 = vrot.lane.b32.xlu0 %v24, 48
    %v26 = vpop.permute.xlu0 %25
    %vm27 = vcmask 425344
    %28 = vst.msk [vmem:[#allocation0] sm:$0x1] %vm27, %v26
    %s29 = scalar_lea.vmem %s0, 11
    %v30 = vld [vmem:[%s29] sm:$0x1]
    %31 = vrot.lane.b32.xlu0 %v30, 44
    %v32 = vpop.permute.xlu0 %31
    %vm33 = vcmask 392544
    %34 = vst.msk [vmem:[#allocation0] sm:$0x1] %vm33, %v32
    %s35 = scalar_lea.vmem %s0, 10
    %v36 = vld [vmem:[%s35] sm:$0x1]
    %37 = vrot.lane.b32.xlu0 %v36, 40
    %v38 = vpop.permute.xlu0 %37
    %vm39 = vcmask 359744
    %40 = vst.msk [vmem:[#allocation0] sm:$0x1] %vm39, %v38
    %s41 = scalar_lea.vmem %s0, 9
    %v42 = vld [vmem:[%s41] sm:$0x1]
    %43 = vrot.lane.b32.xlu0 %v42, 36
    %v44 = vpop.permute.xlu0 %43
    %vm45 = vcmask 326944
    %46 = vst.msk [vmem:[#allocation0] sm:$0x1] %vm45, %v44
    %s47 = scalar_lea.vmem %s0, 8
    %v48 = vld [vmem:[%s47] sm:$0x1]
    %49 = vrot.lane.b32.xlu0 %v48, 32
    %v50 = vpop.permute.xlu0 %49
    %vm51 = vcmask 294144
    %52 = vst.msk [vmem:[#allocation0] sm:$0x1] %vm51, %v50
    %s53 = scalar_lea.vmem %s0, 7
    %v54 = vld [vmem:[%s53] sm:$0x1]
    %55 = vrot.lane.b32.xlu0 %v54, 28
    %v56 = vpop.permute.xlu0 %55
    %vm57 = vcmask 261344
    %58 = vst.msk [vmem:[#allocation0] sm:$0x1] %vm57, %v56
    %s59 = scalar_lea.vmem %s0, 6
    %v60 = vld [vmem:[%s59] sm:$0x1]
    %61 = vrot.lane.b32.xlu0 %v60, 24
    %v62 = vpop.permute.xlu0 %61
    %vm63 = vcmask 228544
    %64 = vst.msk [vmem:[#allocation0] sm:$0x1] %vm63, %v62
    %s65 = scalar_lea.vmem %s0, 5
    %v66 = vld [vmem:[%s65] sm:$0x1]
    %67 = vrot.lane.b32.xlu0 %v66, 20
    %v68 = vpop.permute.xlu0 %67
    %vm69 = vcmask 195744
    %70 = vst.msk [vmem:[#allocation0] sm:$0x1] %vm69, %v68
    %s71 = scalar_lea.vmem %s0, 4
    %v72 = vld [vmem:[%s71] sm:$0x1]
    %73 = vrot.lane.b32.xlu0 %v72, 16
    %v74 = vpop.permute.xlu0 %73
    %vm75 = vcmask 162944
    %76 = vst.msk [vmem:[#allocation0] sm:$0x1] %vm75, %v74
    %s77 = scalar_lea.vmem %s0, 3
    %v78 = vld [vmem:[%s77] sm:$0x1]
    %79 = vrot.lane.b32.xlu0 %v78, 12
    %v80 = vpop.permute.xlu0 %79
    %vm81 = vcmask 130144
    %82 = vst.msk [vmem:[#allocation0] sm:$0x1] %vm81, %v80
    %s83 = scalar_lea.vmem %s0, 2
    %v84 = vld [vmem:[%s83] sm:$0x1]
    %85 = vrot.lane.b32.xlu0 %v84, 8
    %v86 = vpop.permute.xlu0 %85
    %vm87 = vcmask 97344
    %88 = vst.msk [vmem:[#allocation0] sm:$0x1] %vm87, %v86
    %s89 = scalar_lea.vmem %s0, 1
    %v90 = vld [vmem:[%s89] sm:$0x1]
    %91 = vrot.lane.b32.xlu0 %v90, 4
    %v92 = vpop.permute.xlu0 %91
    %vm93 = vcmask 64544
    %94 = vst.msk [vmem:[#allocation0] sm:$0x1] %vm93, %v92
    %s96 = sshllo.u32 0, 1
    %v98 = vld [vmem:[#allocation0] sm:%s96]
    %s99 = sshllo.u32 0, 1
    %100 = vst [vmem:[%s1] sm:%s99] %v98

// kernel: basic_block_forward.1
$region0: #{basic_block_forward.1}
  #allocation0 [shape = 'u32[]', space=smem, size = 0x4, offset = 0x4, fixed_abs, tag = 'smem constant byte address 0x4 - core index']
  #allocation1 [shape = 'u32[144,128]{1,0:T(1,128)}', space=vmem, size = 0x12000, scoped, tag = 'internal scratch']
  #allocation2 [shape = 'f32[36,64]{1,0:T(8,128)}', space=vmem, size = 0x5000, scoped, tag = 'scratch operand']
  %s0 = inlined_call_operand.vmem [shape: f32[2,16,64], index: 0, kind: input, shape index: {}]
  %s1 = inlined_call_operand.vmem [shape: f32[192,64], index: 1, kind: input, shape index: {}]
  %s2 = inlined_call_operand.vmem [shape: f32[192,64], index: 2, kind: input, shape index: {}]
  %s3 = inlined_call_operand.vmem [shape: f32[1,64], index: 3, kind: input, shape index: {}]
  %s4 = inlined_call_operand.vmem [shape: f32[1,64], index: 4, kind: input, shape index: {}]
  %s5 = inlined_call_operand.vmem [shape: f32[1,64], index: 5, kind: input, shape index: {}]
  %s6 = inlined_call_operand.vmem [shape: f32[1,64], index: 6, kind: input, shape index: {}]
  %s7 = inlined_call_operand.vmem [shape: f32[64,64], index: 7, kind: input, shape index: {}]
  %s8 = inlined_call_operand.vmem [shape: f32[2,16,64], index: 8, kind: output, shape index: {}]
  %s9 = sld [smem:[#allocation0]]
  $region42: #{basic_block_forward.1} parent=0
    _
  %s11 = ssub.s32 1, %s9
  %s12 = scalar_select 0, %s11, %s9
  // Predicated region
  $region2: #{basic_block_forward.1} parent=0 // pred_check
    _
  $region3: #{basic_block_forward.1} parent=0 // pred_check_branch
    %14 = sbr.rel (0) target = $region5
  $region4: #{basic_block_forward.1} parent=0 // pred_region
    _
  $region5: #{basic_block_forward.1} parent=0 // pred_fallthru
    _
  // Predicated region
  $region6: #{basic_block_forward.1} parent=0 // pred_check
    _
  $region7: #{basic_block_forward.1} parent=0 // pred_check_branch
    %16 = sbr.rel (0) target = $region9
  $region8: #{basic_block_forward.1} parent=0 // pred_region
    _
  $region9: #{basic_block_forward.1} parent=0 // pred_fallthru
    _
  // Predicated region
  $region10: #{basic_block_forward.1} parent=0 // pred_check
    _
  $region11: #{basic_block_forward.1} parent=0 // pred_check_branch
    %18 = sbr.rel (0) target = $region13
  $region12: #{basic_block_forward.1} parent=0 // pred_region
    _
  $region13: #{basic_block_forward.1} parent=0 // pred_fallthru
    _
  // Predicated region
  $region14: #{basic_block_forward.1} parent=0 // pred_check
    _
  $region15: #{basic_block_forward.1} parent=0 // pred_check_branch
    %20 = sbr.rel (0) target = $region17
  $region16: #{basic_block_forward.1} parent=0 // pred_region
    _
  $region17: #{basic_block_forward.1} parent=0 // pred_fallthru
    _
  // Predicated region
  $region18: #{basic_block_forward.1} parent=0 // pred_check
    _
  $region19: #{basic_block_forward.1} parent=0 // pred_check_branch
    %22 = sbr.rel (0) target = $region21
  $region20: #{basic_block_forward.1} parent=0 // pred_region
    _
  $region21: #{basic_block_forward.1} parent=0 // pred_fallthru
    _
  // Predicated region
  $region22: #{basic_block_forward.1} parent=0 // pred_check
    _
  $region23: #{basic_block_forward.1} parent=0 // pred_check_branch
    %24 = sbr.rel (0) target = $region25
  $region24: #{basic_block_forward.1} parent=0 // pred_region
    _
  $region25: #{basic_block_forward.1} parent=0 // pred_fallthru
    _
  // Predicated region
  $region26: #{basic_block_forward.1} parent=0 // pred_check
    _
  $region27: #{basic_block_forward.1} parent=0 // pred_check_branch
    %26 = sbr.rel (0) target = $region29
  $region28: #{basic_block_forward.1} parent=0 // pred_region
    _
  $region29: #{basic_block_forward.1} parent=0 // pred_fallthru
    _
  // Predicated region
  $region30: #{basic_block_forward.1} parent=0 // pred_check
    _
  $region31: #{basic_block_forward.1} parent=0 // pred_check_branch
    %28 = sbr.rel (0) target = $region33
  $region32: #{basic_block_forward.1} parent=0 // pred_region
    _
  $region33: #{basic_block_forward.1} parent=0 // pred_fallthru
    _
  %v29 = vld [vmem:[%s7] sm:$0xff]
  %v30 = vld [vmem:[%s7 + $0x8] sm:$0xff]
  %v31 = vld [vmem:[%s7 + $0x10] sm:$0xff]
  %v32 = vld [vmem:[%s7 + $0x18] sm:$0xff]
  %v33 = vld [vmem:[%s7 + $0x20] sm:$0xff]
  %v34 = vld [vmem:[%s7 + $0x28] sm:$0xff]
  %v35 = vld [vmem:[%s7 + $0x30] sm:$0xff]
  %v36 = vld [vmem:[%s7 + $0x38] sm:$0xff]
  %vm37 = vcmask 516096
  %38 = vst.msk [vmem:[#allocation2] sm:$0x1] %vm37, 0.0
  %39 = vst.msk [vmem:[#allocation2 + $0x11] sm:$0x1] %vm37, 0.0
  %v40 = vld [vmem:[%s0] sm:$0xff]
  %v41 = vld [vmem:[%s0 + $0x8] sm:$0xff]
  %vm42 = vcmask 523264
  %43 = vst.msk [vmem:[#allocation2 + $0x1] sm:$0xff] %vm42, %v40
  %44 = vst.msk [vmem:[#allocation2 + $0x9] sm:$0xff] %vm42, %v41
  %45 = vst.msk [vmem:[#allocation2 + $0x12] sm:$0x1] %vm37, 0.0
  %46 = vst.msk [vmem:[#allocation2 + $0x23] sm:$0x1] %vm37, 0.0
  %s47 = scalar_lea.vmem %s0, 16
  %v48 = vld [vmem:[%s47] sm:$0xff]
  %v49 = vld [vmem:[%s47 + $0x8] sm:$0xff]
  %50 = vst.msk [vmem:[#allocation2 + $0x13] sm:$0xff] %vm42, %v48
  %51 = vst.msk [vmem:[#allocation2 + $0x1b] sm:$0xff] %vm42, %v49
  %v52 = vld [vmem:[%s1] sm:$0xff]
  %v53 = vld [vmem:[%s1 + $0x8] sm:$0xff]
  %v54 = vld [vmem:[%s1 + $0x10] sm:$0xff]
  %v55 = vld [vmem:[%s1 + $0x18] sm:$0xff]
  %v56 = vld [vmem:[%s1 + $0x20] sm:$0xff]
  %v57 = vld [vmem:[%s1 + $0x28] sm:$0xff]
  %v58 = vld [vmem:[%s1 + $0x30] sm:$0xff]
  %v59 = vld [vmem:[%s1 + $0x38] sm:$0xff]
  %v60 = vld [vmem:[%s1 + $0x40] sm:$0xff]
  %v61 = vld [vmem:[%s1 + $0x48] sm:$0xff]
  %v62 = vld [vmem:[%s1 + $0x50] sm:$0xff]
  %v63 = vld [vmem:[%s1 + $0x58] sm:$0xff]
  %v64 = vld [vmem:[%s1 + $0x60] sm:$0xff]
  %v65 = vld [vmem:[%s1 + $0x68] sm:$0xff]
  %v66 = vld [vmem:[%s1 + $0x70] sm:$0xff]
  %v67 = vld [vmem:[%s1 + $0x78] sm:$0xff]
  %v68 = vld [vmem:[%s1 + $0x80] sm:$0xff]
  %v69 = vld [vmem:[%s1 + $0x88] sm:$0xff]
  %v70 = vld [vmem:[%s1 + $0x90] sm:$0xff]
  %v71 = vld [vmem:[%s1 + $0x98] sm:$0xff]
  %v72 = vld [vmem:[%s1 + $0xa0] sm:$0xff]
  %v73 = vld [vmem:[%s1 + $0xa8] sm:$0xff]
  %v74 = vld [vmem:[%s1 + $0xb0] sm:$0xff]
  %v75 = vld [vmem:[%s1 + $0xb8] sm:$0xff]
  %v76 = vld [vmem:[#allocation2] sm:$0xff]
  %v77 = vld [vmem:[#allocation2 + $0x8] sm:$0xff]
  %v78 = vld [vmem:[#allocation2 + $0x10] sm:$0xff]
  %v79 = vld [vmem:[#allocation2 + $0x18] sm:$0xff]
  %v80 = vld [vmem:[#allocation2 + $0x20] sm:$0x3]
  %v81 = vld [vmem:[#allocation2 + $0x1] sm:$0xff]
  %v82 = vld [vmem:[#allocation2 + $0x9] sm:$0xff]
  %v83 = vld [vmem:[#allocation2 + $0x11] sm:$0xff]
  %v84 = vld [vmem:[#allocation2 + $0x19] sm:$0xff]
  %v85 = vld [vmem:[#allocation2 + $0x21] sm:$0x3]
  %v86 = vld [vmem:[#allocation2 + $0x2] sm:$0xff]
  %v87 = vld [vmem:[#allocation2 + $0xa] sm:$0xff]
  %v88 = vld [vmem:[#allocation2 + $0x12] sm:$0xff]
  %v89 = vld [vmem:[#allocation2 + $0x1a] sm:$0xff]
  %v90 = vld [vmem:[#allocation2 + $0x22] sm:$0x3]
  %96 = vrot.lane.b32.xlu0 %v81, 64
  %v97 = vpop.permute.xlu0 %96
  %98 = vrot.lane.b32.xlu0 %v82, 64
  %v99 = vpop.permute.xlu0 %98
  %100 = vrot.lane.b32.xlu0 %v83, 64
  %v101 = vpop.permute.xlu0 %100
  %102 = vrot.lane.b32.xlu0 %v84, 64
  %v103 = vpop.permute.xlu0 %102
  %104 = vrot.lane.b32.xlu0 %v85, 64
  %v105 = vpop.permute.xlu0 %104
  %v111 = vsel %vm42, %v76, %v97
  %v112 = vsel %vm42, %v77, %v99
  %v113 = vsel %vm42, %v78, %v101
  %v114 = vsel %vm42, %v79, %v103
  %v115 = vsel %vm42, %v80, %v105
  %v117 = vsel %vm42, %v86, 0
  %v120 = vsel %vm42, %v87, 0
  %v123 = vsel %vm42, %v88, 0
  %v126 = vsel %vm42, %v89, 0
  %v129 = vsel %vm42, %v90, 0
  %131 = vmatprep.subr.mxu0 0.0
  %132 = vmatpush1.msra.mxu0 %v52
  %133 = vmatprep.subr.mxu0 0.0
  %134 = vmatpush1.msra.mxu0 %v53
  %135 = vmatprep.subr.mxu0 0.0
  %136 = vmatpush1.msra.mxu0 %v54
  %137 = vmatprep.subr.mxu0 0.0
  %138 = vmatpush1.msra.mxu0 %v55
  %139 = vmatprep.subr.mxu0 0.0
  %140 = vmatpush1.msra.mxu0 %v56
  %141 = vmatprep.subr.mxu0 0.0
  %142 = vmatpush1.msra.mxu0 %v57
  %143 = vmatprep.subr.mxu0 0.0
  %144 = vmatpush1.msra.mxu0 %v58
  %145 = vmatprep.subr.mxu0 0.0
  %146 = vmatpush1.msra.mxu0 %v59
  %147 = vmatprep.subr.mxu0 0.0
  %148 = vmatpush1.msra.mxu0 %v60
  %149 = vmatprep.subr.mxu0 0.0
  %150 = vmatpush1.msra.mxu0 %v61
  %151 = vmatprep.subr.mxu0 0.0
  %152 = vmatpush1.msra.mxu0 %v62
  %153 = vmatprep.subr.mxu0 0.0
  %154 = vmatpush1.msra.mxu0 %v63
  %155 = vmatprep.subr.mxu0 0.0
  %156 = vmatpush1.msra.mxu0 %v64
  %157 = vmatprep.subr.mxu0 0.0
  %158 = vmatpush1.msra.mxu0 %v65
  %159 = vmatprep.subr.mxu0 0.0
  %160 = vmatpush1.msra.mxu0 %v66
  %161 = vmatprep.subr.mxu0 0.0
  %162 = vmatpush1.msra.mxu0 %v67
  %163 = vmatprep.subr.mxu0 0.0
  %164 = vmatpush1.msra.mxu0 %v68
  %165 = vmatprep.subr.mxu0 0.0
  %166 = vmatpush1.msra.mxu0 %v69
  %167 = vmatprep.subr.mxu0 0.0
  %168 = vmatpush1.msra.mxu0 %v70
  %169 = vmatprep.subr.mxu0 0.0
  %170 = vmatpush1.msra.mxu0 %v71
  %171 = vmatprep.subr.mxu0 0.0
  %172 = vmatpush1.msra.mxu0 %v72
  %173 = vmatprep.subr.mxu0 0.0
  %174 = vmatpush1.msra.mxu0 %v73
  %175 = vmatprep.subr.mxu0 0.0
  %176 = vmatpush1.msra.mxu0 %v74
  %177 = vmatprep.subr.mxu0 0.0
  %178 = vmatpush1.msra.mxu0 %v75
  %179 = vmatprep.subr.mxu0 0.0
  %180 = vmatpush1.msra.mxu0 0.0
  %181 = vmatprep.subr.mxu0 0.0
  %182 = vmatpush1.msra.mxu0 0.0
  %183 = vmatprep.subr.mxu0 0.0
  %184 = vmatpush1.msra.mxu0 0.0
  %185 = vmatprep.subr.mxu0 0.0
  %186 = vmatpush1.msra.mxu0 0.0
  %187 = vmatprep.subr.mxu0 0.0
  %188 = vmatpush1.msra.mxu0 0.0
  %189 = vmatprep.subr.mxu0 0.0
  %190 = vmatpush1.msra.mxu0 0.0
  %191 = vmatprep.subr.mxu0 0.0
  %192 = vmatpush1.msra.mxu0 0.0
  %193 = vmatprep.subr.mxu0 0.0
  %194 = vmatpush1.msra.mxu0 0.0
  %195 = vmatprep.mubr.f32.mxu0 %v117
  %196 = vmatmul.mubr.f32.gmra.mrb[0].mxu0 %v111
  %v197 = vpop.f32.mrb[0].mxu0
  %v198 = vadd.f32 0.0, %v197
  %v199 = vpop.f32.mrb[0].mxu0
  %200 = vmatprep.mubr.f32.mxu0 %v120
  %201 = vmatmul.mubr.f32.gmra.mrb[0].mxu0 %v112
  %v202 = vpop.f32.mrb[0].mxu0
  %v203 = vadd.f32 0.0, %v202
  %v204 = vpop.f32.mrb[0].mxu0
  %205 = vmatprep.mubr.f32.mxu0 %v123
  %206 = vmatmul.mubr.f32.gmra.mrb[0].mxu0 %v113
  %v207 = vpop.f32.mrb[0].mxu0
  %v208 = vadd.f32 0.0, %v207
  %v209 = vpop.f32.mrb[0].mxu0
  %210 = vmatprep.mubr.f32.mxu0 %v126
  %211 = vmatmul.mubr.f32.gmra.mrb[0].mxu0 %v114
  %v212 = vpop.f32.mrb[0].mxu0
  %v213 = vadd.f32 0.0, %v212
  %v214 = vpop.f32.mrb[0].mxu0
  %215 = vmatprep.mubr.f32.mxu0 %v129
  %216 = vmatmul.mubr.f32.gmra.mrb[0].mxu0 %v115
  %v217 = vpop.f32.mrb[0].mxu0
  %v218 = vadd.f32 0.0, %v217
  %v219 = vpop.f32.mrb[0].mxu0
  %220 = vdwg.mxu0
  %v221 = vld [vmem:[%s3] sm:$0x1]
  %v222 = vld [vmem:[%s4] sm:$0x1]
  %v223 = vsel %vm42, %v198, 0.0
  %v224 = vsel %vm42, %v203, 0.0
  %v225 = vadd.f32 %v223, %v224
  %v226 = vrot.slane %v225, 4
  %v227 = vadd.f32 %v225, %v226
  %v228 = vrot.slane %v227, 2
  %v229 = vadd.f32 %v227, %v228
  %v230 = vrot.slane %v229, 1
  %v231 = vadd.f32 %v229, %v230
  %vm235 = vcmask 1045504
  %v236 = vrot.slane %v208, 2
  %v237 = vrot.slane %v213, 2
  %v238 = vsel %vm235, %v236, %v237
  %v239 = vrot.slane %v218, 2
  %v240 = vsel %vm235, %v237, %v239
  %v243 = vsel %vm42, %v238, 0.0
  %v244 = vsel %vm42, %v240, 0.0
  %v245 = vadd.f32 %v243, %v244
  %v246 = vrot.slane %v245, 4
  %v247 = vadd.f32 %v245, %v246
  %v248 = vrot.slane %v247, 2
  %v249 = vadd.f32 %v247, %v248
  %v250 = vrot.slane %v249, 1
  %v251 = vadd.f32 %v249, %v250
  %v252 = vadd.f32 %v231, %v251
  %v254 = vsel %vm42, %v252, 0
  %256 = vmatprep.subr.mxu0 0.0
  %257 = vmatpush1.msra.mxu0 %v29
  %258 = vmatprep.subr.mxu0 0.0
  %259 = vmatpush1.msra.mxu0 %v30
  %260 = vmatprep.subr.mxu0 0.0
  %261 = vmatpush1.msra.mxu0 %v31
  %262 = vmatprep.subr.mxu0 0.0
  %263 = vmatpush1.msra.mxu0 %v32
  %264 = vmatprep.subr.mxu0 0.0
  %265 = vmatpush1.msra.mxu0 %v33
  %266 = vmatprep.subr.mxu0 0.0
  %267 = vmatpush1.msra.mxu0 %v34
  %268 = vmatprep.subr.mxu0 0.0
  %269 = vmatpush1.msra.mxu0 %v35
  %270 = vmatprep.subr.mxu0 0.0
  %271 = vmatpush1.msra.mxu0 %v36
  %272 = vmatprep.subr.mxu0 0.0
  %273 = vmatpush1.msra.mxu0 0.0
  %274 = vmatprep.subr.mxu0 0.0
  %275 = vmatpush1.msra.mxu0 0.0
  %276 = vmatprep.subr.mxu0 0.0
  %277 = vmatpush1.msra.mxu0 0.0
  %278 = vmatprep.subr.mxu0 0.0
  %279 = vmatpush1.msra.mxu0 0.0
  %280 = vmatprep.subr.mxu0 0.0
  %281 = vmatpush1.msra.mxu0 0.0
  %282 = vmatprep.subr.mxu0 0.0
  %283 = vmatpush1.msra.mxu0 0.0
  %284 = vmatprep.subr.mxu0 0.0
  %285 = vmatpush1.msra.mxu0 0.0
  %286 = vmatprep.subr.mxu0 0.0
  %287 = vmatpush1.msra.mxu0 0.0
  %288 = vmatprep.subr.mxu0 0.0
  %289 = vmatpush1.msra.mxu0 0.0
  %290 = vmatprep.subr.mxu0 0.0
  %291 = vmatpush1.msra.mxu0 0.0
  %292 = vmatprep.subr.mxu0 0.0
  %293 = vmatpush1.msra.mxu0 0.0
  %294 = vmatprep.subr.mxu0 0.0
  %295 = vmatpush1.msra.mxu0 0.0
  %296 = vmatprep.subr.mxu0 0.0
  %297 = vmatpush1.msra.mxu0 0.0
  %298 = vmatprep.subr.mxu0 0.0
  %299 = vmatpush1.msra.mxu0 0.0
  %300 = vmatprep.subr.mxu0 0.0
  %301 = vmatpush1.msra.mxu0 0.0
  %302 = vmatprep.subr.mxu0 0.0
  %303 = vmatpush1.msra.mxu0 0.0
  %304 = vmatprep.subr.mxu0 0.0
  %305 = vmatpush1.msra.mxu0 0.0
  %306 = vmatprep.subr.mxu0 0.0
  %307 = vmatpush1.msra.mxu0 0.0
  %308 = vmatprep.subr.mxu0 0.0
  %309 = vmatpush1.msra.mxu0 0.0
  %310 = vmatprep.subr.mxu0 0.0
  %311 = vmatpush1.msra.mxu0 0.0
  %312 = vmatprep.subr.mxu0 0.0
  %313 = vmatpush1.msra.mxu0 0.0
  %314 = vmatprep.subr.mxu0 0.0
  %315 = vmatpush1.msra.mxu0 0.0
  %316 = vmatprep.subr.mxu0 0.0
  %317 = vmatpush1.msra.mxu0 0.0
  %318 = vmatprep.subr.mxu0 0.0
  %319 = vmatpush1.msra.mxu0 0.0
  %320 = vmatprep.mubr.f32.mxu0 0.0
  %321 = vmatmul.mubr.f32.gmra.mrb[0].mxu0 %v254
  %v322 = vpop.f32.mrb[0].mxu0
  %v323 = vadd.f32 0.0, %v322
  %v324 = vpop.f32.mrb[0].mxu0
  %325 = vdwg.mxu0
  %v326 = vmul.f32 %v323, 0.001953125
  %v327 = vlaneseq
  %v328 = vshrl.u32 %v327, 7
  %v329 = vsub.s32 0, %v328
  %v330 = vrot.slane %v326, %v329
  %v331 = vsub.f32 %v198, %v330
  %v332 = vsub.f32 %v203, %v330
  %v333 = vmul.f32 %v331, %v331
  %v334 = vmul.f32 %v332, %v332
  %v335 = vsel %vm42, %v333, 0.0
  %v336 = vsel %vm42, %v334, 0.0
  %v337 = vadd.f32 %v335, %v336
  %v338 = vrot.slane %v337, 4
  %v339 = vadd.f32 %v337, %v338
  %v340 = vrot.slane %v339, 2
  %v341 = vadd.f32 %v339, %v340
  %v342 = vrot.slane %v341, 1
  %v343 = vadd.f32 %v341, %v342
  %v344 = vsub.f32 %v208, %v330
  %v345 = vsub.f32 %v213, %v330
  %v346 = vsub.f32 %v218, %v330
  %v347 = vmul.f32 %v344, %v344
  %v348 = vmul.f32 %v345, %v345
  %v349 = vmul.f32 %v346, %v346
  %v353 = vrot.slane %v347, 2
  %v354 = vrot.slane %v348, 2
  %v355 = vsel %vm235, %v353, %v354
  %v356 = vrot.slane %v349, 2
  %v357 = vsel %vm235, %v354, %v356
  %v360 = vsel %vm42, %v355, 0.0
  %v361 = vsel %vm42, %v357, 0.0
  %v362 = vadd.f32 %v360, %v361
  %v363 = vrot.slane %v362, 4
  %v364 = vadd.f32 %v362, %v363
  %v365 = vrot.slane %v364, 2
  %v366 = vadd.f32 %v364, %v365
  %v367 = vrot.slane %v366, 1
  %v368 = vadd.f32 %v366, %v367
  %v369 = vadd.f32 %v343, %v368
  %v371 = vsel %vm42, %v369, 0
  %373 = vmatprep.subr.mxu0 0.0
  %374 = vmatpush1.msra.mxu0 %v29
  %375 = vmatprep.subr.mxu0 0.0
  %376 = vmatpush1.msra.mxu0 %v30
  %377 = vmatprep.subr.mxu0 0.0
  %378 = vmatpush1.msra.mxu0 %v31
  %379 = vmatprep.subr.mxu0 0.0
  %380 = vmatpush1.msra.mxu0 %v32
  %381 = vmatprep.subr.mxu0 0.0
  %382 = vmatpush1.msra.mxu0 %v33
  %383 = vmatprep.subr.mxu0 0.0
  %384 = vmatpush1.msra.mxu0 %v34
  %385 = vmatprep.subr.mxu0 0.0
  %386 = vmatpush1.msra.mxu0 %v35
  %387 = vmatprep.subr.mxu0 0.0
  %388 = vmatpush1.msra.mxu0 %v36
  %389 = vmatprep.subr.mxu0 0.0
  %390 = vmatpush1.msra.mxu0 0.0
  %391 = vmatprep.subr.mxu0 0.0
  %392 = vmatpush1.msra.mxu0 0.0
  %393 = vmatprep.subr.mxu0 0.0
  %394 = vmatpush1.msra.mxu0 0.0
  %395 = vmatprep.subr.mxu0 0.0
  %396 = vmatpush1.msra.mxu0 0.0
  %397 = vmatprep.subr.mxu0 0.0
  %398 = vmatpush1.msra.mxu0 0.0
  %399 = vmatprep.subr.mxu0 0.0
  %400 = vmatpush1.msra.mxu0 0.0
  %401 = vmatprep.subr.mxu0 0.0
  %402 = vmatpush1.msra.mxu0 0.0
  %403 = vmatprep.subr.mxu0 0.0
  %404 = vmatpush1.msra.mxu0 0.0
  %405 = vmatprep.subr.mxu0 0.0
  %406 = vmatpush1.msra.mxu0 0.0
  %407 = vmatprep.subr.mxu0 0.0
  %408 = vmatpush1.msra.mxu0 0.0
  %409 = vmatprep.subr.mxu0 0.0
  %410 = vmatpush1.msra.mxu0 0.0
  %411 = vmatprep.subr.mxu0 0.0
  %412 = vmatpush1.msra.mxu0 0.0
  %413 = vmatprep.subr.mxu0 0.0
  %414 = vmatpush1.msra.mxu0 0.0
  %415 = vmatprep.subr.mxu0 0.0
  %416 = vmatpush1.msra.mxu0 0.0
  %417 = vmatprep.subr.mxu0 0.0
  %418 = vmatpush1.msra.mxu0 0.0
  %419 = vmatprep.subr.mxu0 0.0
  %420 = vmatpush1.msra.mxu0 0.0
  %421 = vmatprep.subr.mxu0 0.0
  %422 = vmatpush1.msra.mxu0 0.0
  %423 = vmatprep.subr.mxu0 0.0
  %424 = vmatpush1.msra.mxu0 0.0
  %425 = vmatprep.subr.mxu0 0.0
  %426 = vmatpush1.msra.mxu0 0.0
  %427 = vmatprep.subr.mxu0 0.0
  %428 = vmatpush1.msra.mxu0 0.0
  %429 = vmatprep.subr.mxu0 0.0
  %430 = vmatpush1.msra.mxu0 0.0
  %431 = vmatprep.subr.mxu0 0.0
  %432 = vmatpush1.msra.mxu0 0.0
  %433 = vmatprep.subr.mxu0 0.0
  %434 = vmatpush1.msra.mxu0 0.0
  %435 = vmatprep.subr.mxu0 0.0
  %436 = vmatpush1.msra.mxu0 0.0
  %437 = vmatprep.mubr.f32.mxu0 0.0
  %438 = vmatmul.mubr.f32.gmra.mrb[0].mxu0 %v371
  %v439 = vpop.f32.mrb[0].mxu0
  %v440 = vadd.f32 0.0, %v439
  %v441 = vpop.f32.mrb[0].mxu0
  %442 = vdwg.mxu0
  %v443 = vmul.f32 %v440, 0.001953125
  %v444 = vadd.f32 %v443, 1e-05
  %v445 = vrsqrt.pop %v444
  %v446 = vmul.f32 %v221, %v445
  %v447 = vmul.f32 %v326, %v446
  %v448 = vsub.f32 %v222, %v447
  %v450 = vlaneseq
  %v451 = vshrl.u32 %v450, 7
  %v452 = vsub.s32 0, %v451
  %v453 = vrot.slane %v446, %v452
  %v455 = vmul.f32 %v198, %v453
  %v456 = vmul.f32 %v203, %v453
  %v458 = vlaneseq
  %v459 = vshrl.u32 %v458, 7
  %v460 = vsub.s32 0, %v459
  %v461 = vrot.slane %v448, %v460
  %v463 = vadd.f32 %v455, %v461
  %v464 = vadd.f32 %v456, %v461
  %v465 = vmax.f32 %v463, 0.0
  %v466 = vmax.f32 %v464, 0.0
  %467 = vst.msk [vmem:[#allocation2 + $0x1] sm:$0xff] %vm42, %v465
  %468 = vst.msk [vmem:[#allocation2 + $0x9] sm:$0xff] %vm42, %v466
  %v469 = vmul.f32 %v208, %v453
  %v470 = vmul.f32 %v213, %v453
  %v471 = vmul.f32 %v218, %v453
  %v472 = vadd.f32 %v469, %v461
  %v473 = vadd.f32 %v470, %v461
  %v474 = vadd.f32 %v471, %v461
  %v475 = vmax.f32 %v472, 0.0
  %v476 = vmax.f32 %v473, 0.0
  %v477 = vmax.f32 %v474, 0.0
  %vm478 = vcmask 523266
  %479 = vst.msk [vmem:[#allocation2 + $0x11] sm:$0xfc] %vm478, %v475
  %480 = vst.msk [vmem:[#allocation2 + $0x19] sm:$0xff] %vm42, %v476
  %vm481 = vcmask 517120
  %482 = vst.msk [vmem:[#allocation2 + $0x21] sm:$0x3] %vm481, %v477
  %v483 = vld [vmem:[%s2] sm:$0xff]
  %v484 = vld [vmem:[%s2 + $0x8] sm:$0xff]
  %v485 = vld [vmem:[%s2 + $0x10] sm:$0xff]
  %v486 = vld [vmem:[%s2 + $0x18] sm:$0xff]
  %v487 = vld [vmem:[%s2 + $0x20] sm:$0xff]
  %v488 = vld [vmem:[%s2 + $0x28] sm:$0xff]
  %v489 = vld [vmem:[%s2 + $0x30] sm:$0xff]
  %v490 = vld [vmem:[%s2 + $0x38] sm:$0xff]
  %v491 = vld [vmem:[%s2 + $0x40] sm:$0xff]
  %v492 = vld [vmem:[%s2 + $0x48] sm:$0xff]
  %v493 = vld [vmem:[%s2 + $0x50] sm:$0xff]
  %v494 = vld [vmem:[%s2 + $0x58] sm:$0xff]
  %v495 = vld [vmem:[%s2 + $0x60] sm:$0xff]
  %v496 = vld [vmem:[%s2 + $0x68] sm:$0xff]
  %v497 = vld [vmem:[%s2 + $0x70] sm:$0xff]
  %v498 = vld [vmem:[%s2 + $0x78] sm:$0xff]
  %v499 = vld [vmem:[%s2 + $0x80] sm:$0xff]
  %v500 = vld [vmem:[%s2 + $0x88] sm:$0xff]
  %v501 = vld [vmem:[%s2 + $0x90] sm:$0xff]
  %v502 = vld [vmem:[%s2 + $0x98] sm:$0xff]
  %v503 = vld [vmem:[%s2 + $0xa0] sm:$0xff]
  %v504 = vld [vmem:[%s2 + $0xa8] sm:$0xff]
  %v505 = vld [vmem:[%s2 + $0xb0] sm:$0xff]
  %v506 = vld [vmem:[%s2 + $0xb8] sm:$0xff]
  %v507 = vld [vmem:[#allocation2] sm:$0xff]
  %v508 = vld [vmem:[#allocation2 + $0x8] sm:$0xff]
  %v509 = vld [vmem:[#allocation2 + $0x10] sm:$0xff]
  %v510 = vld [vmem:[#allocation2 + $0x18] sm:$0xff]
  %v511 = vld [vmem:[#allocation2 + $0x20] sm:$0x3]
  %v512 = vld [vmem:[#allocation2 + $0x1] sm:$0xff]
  %v513 = vld [vmem:[#allocation2 + $0x9] sm:$0xff]
  %v514 = vld [vmem:[#allocation2 + $0x11] sm:$0xff]
  %v515 = vld [vmem:[#allocation2 + $0x19] sm:$0xff]
  %v516 = vld [vmem:[#allocation2 + $0x21] sm:$0x3]
  %v517 = vld [vmem:[#allocation2 + $0x2] sm:$0xff]
  %v518 = vld [vmem:[#allocation2 + $0xa] sm:$0xff]
  %v519 = vld [vmem:[#allocation2 + $0x12] sm:$0xff]
  %v520 = vld [vmem:[#allocation2 + $0x1a] sm:$0xff]
  %v521 = vld [vmem:[#allocation2 + $0x22] sm:$0x3]
  %527 = vrot.lane.b32.xlu0 %v512, 64
  %v528 = vpop.permute.xlu0 %527
  %529 = vrot.lane.b32.xlu0 %v513, 64
  %v530 = vpop.permute.xlu0 %529
  %531 = vrot.lane.b32.xlu0 %v514, 64
  %v532 = vpop.permute.xlu0 %531
  %533 = vrot.lane.b32.xlu0 %v515, 64
  %v534 = vpop.permute.xlu0 %533
  %535 = vrot.lane.b32.xlu0 %v516, 64
  %v536 = vpop.permute.xlu0 %535
  %v542 = vsel %vm42, %v507, %v528
  %v543 = vsel %vm42, %v508, %v530
  %v544 = vsel %vm42, %v509, %v532
  %v545 = vsel %vm42, %v510, %v534
  %v546 = vsel %vm42, %v511, %v536
  %v548 = vsel %vm42, %v517, 0
  %v551 = vsel %vm42, %v518, 0
  %v554 = vsel %vm42, %v519, 0
  %v557 = vsel %vm42, %v520, 0
  %v560 = vsel %vm42, %v521, 0
  %562 = vmatprep.subr.mxu0 0.0
  %563 = vmatpush1.msra.mxu0 %v483
  %564 = vmatprep.subr.mxu0 0.0
  %565 = vmatpush1.msra.mxu0 %v484
  %566 = vmatprep.subr.mxu0 0.0
  %567 = vmatpush1.msra.mxu0 %v485
  %568 = vmatprep.subr.mxu0 0.0
  %569 = vmatpush1.msra.mxu0 %v486
  %570 = vmatprep.subr.mxu0 0.0
  %571 = vmatpush1.msra.mxu0 %v487
  %572 = vmatprep.subr.mxu0 0.0
  %573 = vmatpush1.msra.mxu0 %v488
  %574 = vmatprep.subr.mxu0 0.0
  %575 = vmatpush1.msra.mxu0 %v489
  %576 = vmatprep.subr.mxu0 0.0
  %577 = vmatpush1.msra.mxu0 %v490
  %578 = vmatprep.subr.mxu0 0.0
  %579 = vmatpush1.msra.mxu0 %v491
  %580 = vmatprep.subr.mxu0 0.0
  %581 = vmatpush1.msra.mxu0 %v492
  %582 = vmatprep.subr.mxu0 0.0
  %583 = vmatpush1.msra.mxu0 %v493
  %584 = vmatprep.subr.mxu0 0.0
  %585 = vmatpush1.msra.mxu0 %v494
  %586 = vmatprep.subr.mxu0 0.0
  %587 = vmatpush1.msra.mxu0 %v495
  %588 = vmatprep.subr.mxu0 0.0
  %589 = vmatpush1.msra.mxu0 %v496
  %590 = vmatprep.subr.mxu0 0.0
  %591 = vmatpush1.msra.mxu0 %v497
  %592 = vmatprep.subr.mxu0 0.0
  %593 = vmatpush1.msra.mxu0 %v498
  %594 = vmatprep.subr.mxu0 0.0
  %595 = vmatpush1.msra.mxu0 %v499
  %596 = vmatprep.subr.mxu0 0.0
  %597 = vmatpush1.msra.mxu0 %v500
  %598 = vmatprep.subr.mxu0 0.0
  %599 = vmatpush1.msra.mxu0 %v501
  %600 = vmatprep.subr.mxu0 0.0
  %601 = vmatpush1.msra.mxu0 %v502
  %602 = vmatprep.subr.mxu0 0.0
  %603 = vmatpush1.msra.mxu0 %v503
  %604 = vmatprep.subr.mxu0 0.0
  %605 = vmatpush1.msra.mxu0 %v504
  %606 = vmatprep.subr.mxu0 0.0
  %607 = vmatpush1.msra.mxu0 %v505
  %608 = vmatprep.subr.mxu0 0.0
  %609 = vmatpush1.msra.mxu0 %v506
  %610 = vmatprep.subr.mxu0 0.0
  %611 = vmatpush1.msra.mxu0 0.0
  %612 = vmatprep.subr.mxu0 0.0
  %613 = vmatpush1.msra.mxu0 0.0
  %614 = vmatprep.subr.mxu0 0.0
  %615 = vmatpush1.msra.mxu0 0.0
  %616 = vmatprep.subr.mxu0 0.0
  %617 = vmatpush1.msra.mxu0 0.0
  %618 = vmatprep.subr.mxu0 0.0
  %619 = vmatpush1.msra.mxu0 0.0
  %620 = vmatprep.subr.mxu0 0.0
  %621 = vmatpush1.msra.mxu0 0.0
  %622 = vmatprep.subr.mxu0 0.0
  %623 = vmatpush1.msra.mxu0 0.0
  %624 = vmatprep.subr.mxu0 0.0
  %625 = vmatpush1.msra.mxu0 0.0
  %626 = vmatprep.mubr.f32.mxu0 %v548
  %627 = vmatmul.mubr.f32.gmra.mrb[0].mxu0 %v542
  %v628 = vpop.f32.mrb[0].mxu0
  %v629 = vadd.f32 0.0, %v628
  %v630 = vpop.f32.mrb[0].mxu0
  %631 = vmatprep.mubr.f32.mxu0 %v551
  %632 = vmatmul.mubr.f32.gmra.mrb[0].mxu0 %v543
  %v633 = vpop.f32.mrb[0].mxu0
  %v634 = vadd.f32 0.0, %v633
  %v635 = vpop.f32.mrb[0].mxu0
  %636 = vmatprep.mubr.f32.mxu0 %v554
  %637 = vmatmul.mubr.f32.gmra.mrb[0].mxu0 %v544
  %v638 = vpop.f32.mrb[0].mxu0
  %v639 = vadd.f32 0.0, %v638
  %v640 = vpop.f32.mrb[0].mxu0
  %641 = vmatprep.mubr.f32.mxu0 %v557
  %642 = vmatmul.mubr.f32.gmra.mrb[0].mxu0 %v545
  %v643 = vpop.f32.mrb[0].mxu0
  %v644 = vadd.f32 0.0, %v643
  %v645 = vpop.f32.mrb[0].mxu0
  %646 = vmatprep.mubr.f32.mxu0 %v560
  %647 = vmatmul.mubr.f32.gmra.mrb[0].mxu0 %v546
  %v648 = vpop.f32.mrb[0].mxu0
  %v649 = vadd.f32 0.0, %v648
  %v650 = vpop.f32.mrb[0].mxu0
  %651 = vdwg.mxu0
  %v652 = vld [vmem:[%s5] sm:$0x1]
  %v653 = vld [vmem:[%s6] sm:$0x1]
  %v654 = vsel %vm42, %v629, 0.0
  %v655 = vsel %vm42, %v634, 0.0
  %v656 = vadd.f32 %v654, %v655
  %v657 = vrot.slane %v656, 4
  %v658 = vadd.f32 %v656, %v657
  %v659 = vrot.slane %v658, 2
  %v660 = vadd.f32 %v658, %v659
  %v661 = vrot.slane %v660, 1
  %v662 = vadd.f32 %v660, %v661
  %v666 = vrot.slane %v639, 2
  %v667 = vrot.slane %v644, 2
  %v668 = vsel %vm235, %v666, %v667
  %v669 = vrot.slane %v649, 2
  %v670 = vsel %vm235, %v667, %v669
  %v673 = vsel %vm42, %v668, 0.0
  %v674 = vsel %vm42, %v670, 0.0
  %v675 = vadd.f32 %v673, %v674
  %v676 = vrot.slane %v675, 4
  %v677 = vadd.f32 %v675, %v676
  %v678 = vrot.slane %v677, 2
  %v679 = vadd.f32 %v677, %v678
  %v680 = vrot.slane %v679, 1
  %v681 = vadd.f32 %v679, %v680
  %v682 = vadd.f32 %v662, %v681
  %v684 = vsel %vm42, %v682, 0
  %686 = vmatprep.subr.mxu0 0.0
  %687 = vmatpush1.msra.mxu0 %v29
  %688 = vmatprep.subr.mxu0 0.0
  %689 = vmatpush1.msra.mxu0 %v30
  %690 = vmatprep.subr.mxu0 0.0
  %691 = vmatpush1.msra.mxu0 %v31
  %692 = vmatprep.subr.mxu0 0.0
  %693 = vmatpush1.msra.mxu0 %v32
  %694 = vmatprep.subr.mxu0 0.0
  %695 = vmatpush1.msra.mxu0 %v33
  %696 = vmatprep.subr.mxu0 0.0
  %697 = vmatpush1.msra.mxu0 %v34
  %698 = vmatprep.subr.mxu0 0.0
  %699 = vmatpush1.msra.mxu0 %v35
  %700 = vmatprep.subr.mxu0 0.0
  %701 = vmatpush1.msra.mxu0 %v36
  %702 = vmatprep.subr.mxu0 0.0
  %703 = vmatpush1.msra.mxu0 0.0
  %704 = vmatprep.subr.mxu0 0.0
  %705 = vmatpush1.msra.mxu0 0.0
  %706 = vmatprep.subr.mxu0 0.0
  %707 = vmatpush1.msra.mxu0 0.0
  %708 = vmatprep.subr.mxu0 0.0
  %709 = vmatpush1.msra.mxu0 0.0
  %710 = vmatprep.subr.mxu0 0.0
  %711 = vmatpush1.msra.mxu0 0.0
  %712 = vmatprep.subr.mxu0 0.0
  %713 = vmatpush1.msra.mxu0 0.0
  %714 = vmatprep.subr.mxu0 0.0
  %715 = vmatpush1.msra.mxu0 0.0
  %716 = vmatprep.subr.mxu0 0.0
  %717 = vmatpush1.msra.mxu0 0.0
  %718 = vmatprep.subr.mxu0 0.0
  %719 = vmatpush1.msra.mxu0 0.0
  %720 = vmatprep.subr.mxu0 0.0
  %721 = vmatpush1.msra.mxu0 0.0
  %722 = vmatprep.subr.mxu0 0.0
  %723 = vmatpush1.msra.mxu0 0.0
  %724 = vmatprep.subr.mxu0 0.0
  %725 = vmatpush1.msra.mxu0 0.0
  %726 = vmatprep.subr.mxu0 0.0
  %727 = vmatpush1.msra.mxu0 0.0
  %728 = vmatprep.subr.mxu0 0.0
  %729 = vmatpush1.msra.mxu0 0.0
  %730 = vmatprep.subr.mxu0 0.0
  %731 = vmatpush1.msra.mxu0 0.0
  %732 = vmatprep.subr.mxu0 0.0
  %733 = vmatpush1.msra.mxu0 0.0
  %734 = vmatprep.subr.mxu0 0.0
  %735 = vmatpush1.msra.mxu0 0.0
  %736 = vmatprep.subr.mxu0 0.0
  %737 = vmatpush1.msra.mxu0 0.0
  %738 = vmatprep.subr.mxu0 0.0
  %739 = vmatpush1.msra.mxu0 0.0
  %740 = vmatprep.subr.mxu0 0.0
  %741 = vmatpush1.msra.mxu0 0.0
  %742 = vmatprep.subr.mxu0 0.0
  %743 = vmatpush1.msra.mxu0 0.0
  %744 = vmatprep.subr.mxu0 0.0
  %745 = vmatpush1.msra.mxu0 0.0
  %746 = vmatprep.subr.mxu0 0.0
  %747 = vmatpush1.msra.mxu0 0.0
  %748 = vmatprep.subr.mxu0 0.0
  %749 = vmatpush1.msra.mxu0 0.0
  %750 = vmatprep.mubr.f32.mxu0 0.0
  %751 = vmatmul.mubr.f32.gmra.mrb[0].mxu0 %v684
  %v752 = vpop.f32.mrb[0].mxu0
  %v753 = vadd.f32 0.0, %v752
  %v754 = vpop.f32.mrb[0].mxu0
  %755 = vdwg.mxu0
  %v756 = vmul.f32 %v753, 0.001953125
  %v757 = vlaneseq
  %v758 = vshrl.u32 %v757, 7
  %v759 = vsub.s32 0, %v758
  %v760 = vrot.slane %v756, %v759
  %v761 = vsub.f32 %v629, %v760
  %v762 = vsub.f32 %v634, %v760
  %v763 = vmul.f32 %v761, %v761
  %v764 = vmul.f32 %v762, %v762
  %v765 = vsel %vm42, %v763, 0.0
  %v766 = vsel %vm42, %v764, 0.0
  %v767 = vadd.f32 %v765, %v766
  %v768 = vrot.slane %v767, 4
  %v769 = vadd.f32 %v767, %v768
  %v770 = vrot.slane %v769, 2
  %v771 = vadd.f32 %v769, %v770
  %v772 = vrot.slane %v771, 1
  %v773 = vadd.f32 %v771, %v772
  %v774 = vsub.f32 %v639, %v760
  %v775 = vsub.f32 %v644, %v760
  %v776 = vsub.f32 %v649, %v760
  %v777 = vmul.f32 %v774, %v774
  %v778 = vmul.f32 %v775, %v775
  %v779 = vmul.f32 %v776, %v776
  %v783 = vrot.slane %v777, 2
  %v784 = vrot.slane %v778, 2
  %v785 = vsel %vm235, %v783, %v784
  %v786 = vrot.slane %v779, 2
  %v787 = vsel %vm235, %v784, %v786
  %v790 = vsel %vm42, %v785, 0.0
  %v791 = vsel %vm42, %v787, 0.0
  %v792 = vadd.f32 %v790, %v791
  %v793 = vrot.slane %v792, 4
  %v794 = vadd.f32 %v792, %v793
  %v795 = vrot.slane %v794, 2
  %v796 = vadd.f32 %v794, %v795
  %v797 = vrot.slane %v796, 1
  %v798 = vadd.f32 %v796, %v797
  %v799 = vadd.f32 %v773, %v798
  %v801 = vsel %vm42, %v799, 0
  %803 = vmatprep.subr.mxu0 0.0
  %804 = vmatpush1.msra.mxu0 %v29
  %805 = vmatprep.subr.mxu0 0.0
  %806 = vmatpush1.msra.mxu0 %v30
  %807 = vmatprep.subr.mxu0 0.0
  %808 = vmatpush1.msra.mxu0 %v31
  %809 = vmatprep.subr.mxu0 0.0
  %810 = vmatpush1.msra.mxu0 %v32
  %811 = vmatprep.subr.mxu0 0.0
  %812 = vmatpush1.msra.mxu0 %v33
  %813 = vmatprep.subr.mxu0 0.0
  %814 = vmatpush1.msra.mxu0 %v34
  %815 = vmatprep.subr.mxu0 0.0
  %816 = vmatpush1.msra.mxu0 %v35
  %817 = vmatprep.subr.mxu0 0.0
  %818 = vmatpush1.msra.mxu0 %v36
  %819 = vmatprep.subr.mxu0 0.0
  %820 = vmatpush1.msra.mxu0 0.0
  %821 = vmatprep.subr.mxu0 0.0
  %822 = vmatpush1.msra.mxu0 0.0
  %823 = vmatprep.subr.mxu0 0.0
  %824 = vmatpush1.msra.mxu0 0.0
  %825 = vmatprep.subr.mxu0 0.0
  %826 = vmatpush1.msra.mxu0 0.0
  %827 = vmatprep.subr.mxu0 0.0
  %828 = vmatpush1.msra.mxu0 0.0
  %829 = vmatprep.subr.mxu0 0.0
  %830 = vmatpush1.msra.mxu0 0.0
  %831 = vmatprep.subr.mxu0 0.0
  %832 = vmatpush1.msra.mxu0 0.0
  %833 = vmatprep.subr.mxu0 0.0
  %834 = vmatpush1.msra.mxu0 0.0
  %835 = vmatprep.subr.mxu0 0.0
  %836 = vmatpush1.msra.mxu0 0.0
  %837 = vmatprep.subr.mxu0 0.0
  %838 = vmatpush1.msra.mxu0 0.0
  %839 = vmatprep.subr.mxu0 0.0
  %840 = vmatpush1.msra.mxu0 0.0
  %841 = vmatprep.subr.mxu0 0.0
  %842 = vmatpush1.msra.mxu0 0.0
  %843 = vmatprep.subr.mxu0 0.0
  %844 = vmatpush1.msra.mxu0 0.0
  %845 = vmatprep.subr.mxu0 0.0
  %846 = vmatpush1.msra.mxu0 0.0
  %847 = vmatprep.subr.mxu0 0.0
  %848 = vmatpush1.msra.mxu0 0.0
  %849 = vmatprep.subr.mxu0 0.0
  %850 = vmatpush1.msra.mxu0 0.0
  %851 = vmatprep.subr.mxu0 0.0
  %852 = vmatpush1.msra.mxu0 0.0
  %853 = vmatprep.subr.mxu0 0.0
  %854 = vmatpush1.msra.mxu0 0.0
  %855 = vmatprep.subr.mxu0 0.0
  %856 = vmatpush1.msra.mxu0 0.0
  %857 = vmatprep.subr.mxu0 0.0
  %858 = vmatpush1.msra.mxu0 0.0
  %859 = vmatprep.subr.mxu0 0.0
  %860 = vmatpush1.msra.mxu0 0.0
  %861 = vmatprep.subr.mxu0 0.0
  %862 = vmatpush1.msra.mxu0 0.0
  %863 = vmatprep.subr.mxu0 0.0
  %864 = vmatpush1.msra.mxu0 0.0
  %865 = vmatprep.subr.mxu0 0.0
  %866 = vmatpush1.msra.mxu0 0.0
  %867 = vmatprep.mubr.f32.mxu0 0.0
  %868 = vmatmul.mubr.f32.gmra.mrb[0].mxu0 %v801
  %v869 = vpop.f32.mrb[0].mxu0
  %v870 = vadd.f32 0.0, %v869
  %v871 = vpop.f32.mrb[0].mxu0
  %872 = vdwg.mxu0
  %v873 = vmul.f32 %v870, 0.001953125
  %v874 = vadd.f32 %v873, 1e-05
  %v875 = vrsqrt.pop %v874
  %v876 = vmul.f32 %v652, %v875
  %v877 = vmul.f32 %v756, %v876
  %v878 = vsub.f32 %v653, %v877
  %v880 = vlaneseq
  %v881 = vshrl.u32 %v880, 7
  %v882 = vsub.s32 0, %v881
  %v883 = vrot.slane %v876, %v882
  %v885 = vmul.f32 %v629, %v883
  %v886 = vmul.f32 %v634, %v883
  %v888 = vlaneseq
  %v889 = vshrl.u32 %v888, 7
  %v890 = vsub.s32 0, %v889
  %v891 = vrot.slane %v878, %v890
  %v893 = vadd.f32 %v885, %v891
  %v894 = vadd.f32 %v886, %v891
  %v895 = vld [vmem:[%s0] sm:$0xff]
  %v896 = vld [vmem:[%s0 + $0x8] sm:$0xff]
  %v897 = vadd.f32 %v893, %v895
  %v898 = vadd.f32 %v894, %v896
  %v899 = vmax.f32 %v897, 0.0
  %v900 = vmax.f32 %v898, 0.0
  %901 = vst.msk [vmem:[%s8] sm:$0xff] %vm42, %v899
  %902 = vst.msk [vmem:[%s8 + $0x8] sm:$0xff] %vm42, %v900
  %v903 = vmul.f32 %v639, %v883
  %v904 = vmul.f32 %v644, %v883
  %v905 = vmul.f32 %v649, %v883
  %v906 = vadd.f32 %v903, %v891
  %v907 = vadd.f32 %v904, %v891
  %v908 = vadd.f32 %v905, %v891
  %v909 = vld [vmem:[%s47] sm:$0xff]
  %v910 = vld [vmem:[%s47 + $0x8] sm:$0xff]
  %vm913 = vcmask 1041408
  %v914 = vrot.slane %v909, 6
  %v915 = vrot.slane %v910, 6
  %v916 = vsel %vm913, %v914, %v915
  %v920 = vadd.f32 %v906, %v914
  %v921 = vadd.f32 %v907, %v916
  %v922 = vadd.f32 %v908, %v915
  %v923 = vmax.f32 %v920, 0.0
  %v924 = vmax.f32 %v921, 0.0
  %v925 = vmax.f32 %v922, 0.0
  %s926 = scalar_lea.vmem %s8, 16
  %927 = vst.msk [vmem:[%s926 - $0x2] sm:$0xfc] %vm478, %v923
  %928 = vst.msk [vmem:[%s926 + $0x6] sm:$0xff] %vm42, %v924
  %929 = vst.msk [vmem:[%s926 + $0xe] sm:$0x3] %vm481, %v925
  // Predicated region
  $region34: #{basic_block_forward.1} parent=0 // pred_check
    _
  $region35: #{basic_block_forward.1} parent=0 // pred_check_branch
    %931 = sbr.rel (0) target = $region37
  $region36: #{basic_block_forward.1} parent=0 // pred_region
    _
  $region37: #{basic_block_forward.1} parent=0 // pred_fallthru
    _
  // Predicated region
  $region38: #{basic_block_forward.1} parent=0 // pred_check
    _
  $region39: #{basic_block_forward.1} parent=0 // pred_check_branch
    %933 = sbr.rel (0) target = $region41
  $region40: #{basic_block_forward.1} parent=0 // pred_region
    _
  $region41: #{basic_block_forward.1} parent=0 // pred_fallthru
    _

</llo_original>
